<compile_context>
chip_gen: v7x
topology: tpu7x:2x2x1
jax: 0.10.0
libtpu: 0.0.40
codegen_flags: <defaults>
</compile_context>

<pallas_src>
import functools

import jax
import jax.numpy as jnp
from jax import lax
from jax.experimental import pallas as pl
from jax.experimental.pallas import tpu as pltpu


def _round_up(x, m):
    return ((x + m - 1) // m) * m


def _l2norm(x, eps=1e-12):
    # matches F.normalize(x, dim=-1): x / max(||x||, eps)  (rsqrt form)
    ssq = jnp.sum(x * x, axis=-1, keepdims=True)
    return x * lax.rsqrt(jnp.maximum(ssq, eps * eps))


def _tpu_info():
    try:
        return pltpu.get_tpu_info()
    except Exception:
        return None


def _vmem_budget_bytes(info):
    cap = None
    try:
        if info is not None:
            for name in ("vmem_capacity_bytes", "vmem_size_bytes", "vmem_bytes"):
                v = getattr(info, name, None)
                if isinstance(v, int) and v > 0:
                    cap = int(v)
                    break
    except Exception:
        cap = None
    if cap is None:
        cap = 64 * 1024 * 1024          # conservative: v7x has 64 MiB per TC
    return int(cap * 3 // 4)


def _num_tensorcores(info):
    try:
        if info is not None:
            for name in ("num_cores", "core_count", "tensor_core_count",
                         "num_tensorcores"):
                v = getattr(info, name, None)
                if isinstance(v, int) and v > 0:
                    return int(v)
    except Exception:
        pass
    return 1


def _pick_tile_m(m, d_pad, k_pad, d_aug, vmem_budget):
    """Largest token-tile (from 2048 down) whose working set fits the budget."""
    m8 = max(8, _round_up(m, 8))

    def usage(tm):
        return (2 * tm * d_pad * 2        # bf16 x tile, double-buffered
                + 2 * d_pad * k_pad * 2   # bf16 codebook (<= 2 buffers)
                + tm * k_pad * 6          # f32 dist + bf16 one-hot
                + tm * d_aug * 6          # f32 xn + bf16 copy
                + k_pad * d_aug * 4       # f32 embed_sum accumulator
                + 16 * tm)                # index row + slack

    cands = [t for t in (2048, 1024, 512, 256, 128) if t <= m8]
    if not cands:
        return m8                         # whole (tiny) problem in one tile
    for tm in cands:                      # descending: biggest that fits
        if usage(tm) * 3 // 2 <= vmem_budget:
            return tm
    return cands[-1]


def _codebook_kernel(x_ref, en_ref, ind_ref, esum_ref, *,
                     m_valid, d_real, k_real, steps):
    """One TM-token tile against the full padded, pre-normalized codebook.

    x_ref    : (TM, D_pad)        bf16  zero-padded raw inputs
    en_ref   : (D_pad, K_pad)     bf16  L2-normalized codebook, transposed
    ind_ref  : (1, 1, TM)         i32   argmax code index per token (lane-dense)
    esum_ref : (1, K_pad, D_aug)  f32   accumulator onehot^T @ [xn | 1];
                                        column `d_real` carries the exact counts
    """
    c = pl.program_id(0)        # megacore split ("parallel")
    s = pl.program_id(1)        # token-tile step ("arbitrary" accumulator axis)

    @pl.when(s == 0)
    def _init():
        esum_ref[...] = jnp.zeros_like(esum_ref)

    tm, d_pad = x_ref.shape
    k_pad = en_ref.shape[1]
    d_aug = esum_ref.shape[2]

    # F.normalize(flatten, dim=-1): upcast the bf16 stream to f32 for the norm.
    x = x_ref[...].astype(jnp.float32)                          # (TM, D_pad)
    ssq = jnp.sum(x * x, axis=-1, keepdims=True)
    xn = x * lax.rsqrt(jnp.maximum(ssq, 1e-24))
    xn_bf = xn.astype(jnp.bfloat16)

    # dist = flatten_n @ embed_n.T   (bf16 MXU operands, f32 accumulation)
    dist = jnp.dot(xn_bf, en_ref[...], preferred_element_type=jnp.float32)

    col = lax.broadcasted_iota(jnp.int32, (tm, k_pad), 1)
    if k_pad > k_real:                                          # mask padded codes
        dist = jnp.where(col < k_real, dist, jnp.float32(-1e30))

    # embed_ind = dist.max(dim=-1).indices  (first occurrence on ties)
    maxv = jnp.max(dist, axis=-1, keepdims=True)                # (TM, 1)
    ind = jnp.min(jnp.where(dist == maxv, col, k_pad),
                  axis=-1, keepdims=True)                       # (TM, 1)

    # Lane-dense writeback: relayout the tiny (TM,1) column to a (1,TM) row.
    ind_row = ind.reshape(1, tm)
    ind_ref[...] = ind_row[None]                                # (1,1,TM)

    # Padded-token mask as a (1, TM) row (no (TM,K) iota).
    tok = lax.broadcasted_iota(jnp.int32, (1, tm), 1) + (c * steps + s) * tm
    valid = tok < m_valid

    # One-hot built directly transposed: (K_pad, TM).
    row_k = lax.broadcasted_iota(jnp.int32, (k_pad, tm), 0)
    hit_t = (row_k == ind_row) & valid
    hit_bf = hit_t.astype(jnp.bfloat16)

    # Fused bins: a ones column at lane `d_real` makes onehot^T @ [xn | 1]
    # produce the exact per-code counts in esum[:, d_real].
    if d_real < d_pad:
        col_d = lax.broadcasted_iota(jnp.int32, (tm, d_pad), 1)
        xn_aug = jnp.where(col_d == d_real, jnp.ones((), jnp.bfloat16), xn_bf)
    else:   # D already a multiple of 128: append a ones block (VMEM-only)
        xn_aug = jnp.concatenate(
            [xn_bf, jnp.ones((tm, d_aug - d_pad), jnp.bfloat16)], axis=1)

    # embed_sum^T += onehot^T @ [xn | 1]   (plain MXU matmul, no transposes)
    esum_ref[...] += jnp.dot(hit_bf, xn_aug,
                             preferred_element_type=jnp.float32)[None]


def cosine_sim_codebook_stats(flatten, embed_n):
    """Pallas forward statistics for CosineSimCodebook.

    flatten : (M, D) float  raw flattened inputs (normalized inside the kernel)
    embed_n : (K, D) f32    L2-normalized codebook
    Returns (embed_ind (M,) i32, bins (K,) f32, embed_sum_t (K, D) f32), with
    embed_sum_t == onehot^T @ l2norm(flatten) (i.e. torch `embed_sum.t()`).
    """
    m, d = flatten.shape
    k = embed_n.shape[0]

    d_pad = _round_up(max(d, 1), 128)
    k_pad = _round_up(max(k, 1), 128)
    d_aug = d_pad if d < d_pad else d_pad + 128     # room for the ones column

    info = _tpu_info()
    vmem_budget = _vmem_budget_bytes(info)
    num_cores = _num_tensorcores(info)

    tm = _pick_tile_m(m, d_pad, k_pad, d_aug, vmem_budget)
    tiles = pl.cdiv(m, tm)
    nc = num_cores if (num_cores > 1 and tiles >= num_cores) else 1
    steps = pl.cdiv(tiles, nc)
    m_pad = nc * steps * tm

    # bf16 HBM stream for x; codebook pre-transposed to (D_pad, K_pad) bf16.
    x = jnp.pad(flatten.astype(jnp.bfloat16), ((0, m_pad - m), (0, d_pad - d)))
    en_dk = jnp.pad(embed_n, ((0, k_pad - k), (0, d_pad - d))).T
    en_dk = en_dk.astype(jnp.bfloat16)

    cb_kwargs = {}
    if d_pad * k_pad * 2 > (1 << 20) and hasattr(pl, "Buffered"):
        cb_kwargs["pipeline_mode"] = pl.Buffered(1)   # resident: single-buffer
    cb_spec = pl.BlockSpec((d_pad, k_pad), lambda c, s: (0, 0), **cb_kwargs)

    kernel = functools.partial(_codebook_kernel, m_valid=m, d_real=d,
                               k_real=k, steps=steps)

    ind3, esum_pc = pl.pallas_call(
        kernel,
        out_shape=(
            jax.ShapeDtypeStruct((nc * steps, 1, tm), jnp.int32),   # indices
            jax.ShapeDtypeStruct((nc, k_pad, d_aug), jnp.float32),  # esum (+bins)
        ),
        grid_spec=pltpu.PrefetchScalarGridSpec(
            num_scalar_prefetch=0,
            grid=(nc, steps),
            in_specs=[
                pl.BlockSpec((tm, d_pad), lambda c, s: (c * steps + s, 0)),
                cb_spec,
            ],
            out_specs=[
                pl.BlockSpec((1, 1, tm), lambda c, s: (c * steps + s, 0, 0)),
                pl.BlockSpec((1, k_pad, d_aug), lambda c, s: (c, 0, 0)),
            ],
        ),
        compiler_params=pltpu.CompilerParams(
            dimension_semantics=("parallel", "arbitrary"),
            vmem_limit_bytes=vmem_budget,
        ),
    )(x, en_dk)

    embed_ind = ind3.reshape(-1)[:m]
    esum = jnp.sum(esum_pc, axis=0)                # reduce megacore partials
    bins = esum[:k, d]                             # fused, exact f32 counts
    embed_sum_t = esum[:k, :d]                     # (K, D) == embed_sum.t()
    return embed_ind, bins, embed_sum_t


class CosineSimCodebook:
    """JAX/Pallas port of the PyTorch CosineSimCodebook forward pass.

    Notes:
      * embed_ind is int32 (torch returns int64); fine for codebook_size < 2^31.
    """

    def __init__(self, dim, codebook_size, kmeans_init=False, kmeans_iters=10,
                 decay=0.8, eps=1e-5, *, key):
        if kmeans_init:
            # TODO(synk): kmeans() initialization on first forward is not ported.
            raise NotImplementedError("kmeans_init=True is not supported")
        self.dim = dim
        self.codebook_size = codebook_size
        self.kmeans_iters = kmeans_iters
        self.decay = decay
        self.eps = eps
        # embed = F.normalize(torch.randn(codebook_size, dim), dim=-1)
        embed = jax.random.normal(key, (codebook_size, dim), jnp.float32)
        self.embed = _l2norm(embed)
        self.initted = True

    def forward(self, x, training=True):
        shape = x.shape
        flatten = x.reshape(-1, shape[-1]).astype(jnp.float32)

        embed_n = _l2norm(self.embed)          # F.normalize(self.embed, dim=-1)
        embed_ind, bins, embed_sum_t = cosine_sim_codebook_stats(flatten, embed_n)

        embed_ind = embed_ind.reshape(shape[:-1])
        # quantize = F.embedding(embed_ind, self.embed): gather on raw codebook
        quantize = jnp.take(self.embed, embed_ind, axis=0)

        if training:
            zero_mask = bins == 0
            bins_safe = jnp.where(zero_mask, 1.0, bins)
            embed_normalized = _l2norm(embed_sum_t / bins_safe[:, None])
            embed_normalized = jnp.where(zero_mask[:, None], embed_n,
                                         embed_normalized)
            # ema_inplace(self.embed, embed_normalized, self.decay)
            self.embed = (self.embed * self.decay
                          + embed_normalized * (1.0 - self.decay))
        return quantize, embed_ind


if __name__ == "__main__":
    key = jax.random.PRNGKey(0)
    k_embed, k_x = jax.random.split(key)

    dim, codebook_size = 32, 64
    B, N = 2, 16                                     # x: (batch, seq, dim)

    cb = CosineSimCodebook(dim, codebook_size, key=k_embed)
    embed_before = cb.embed

    x = jax.random.normal(k_x, (B, N, dim), jnp.float32)
    quantize, embed_ind = cb.forward(x, training=True)
    jax.block_until_ready((quantize, embed_ind, cb.embed))

    assert quantize.shape == (B, N, dim)
    assert embed_ind.shape == (B, N)
    assert cb.embed.shape == (codebook_size, dim)
    assert int(jnp.min(embed_ind)) >= 0
    assert int(jnp.max(embed_ind)) < codebook_size

    # Reference checks (loose where bf16 MXU operands are involved).
    flat = x.reshape(-1, dim)
    xn_ref = _l2norm(flat)
    en_ref = _l2norm(embed_before)
    sims = xn_ref @ en_ref.T
    idx = embed_ind.reshape(-1)
    chosen = jnp.take_along_axis(sims, idx[:, None], axis=1)[:, 0]
    assert bool(jnp.all(chosen >= jnp.max(sims, axis=1) - 2e-2))

    # quantize rows must be the raw codebook rows at the selected indices.
    assert bool(jnp.allclose(quantize.reshape(-1, dim), embed_before[idx]))

    # Kernel statistics vs f32 reference built from the kernel's own indices.
    idx2, bins, esum_t = cosine_sim_codebook_stats(flat, en_ref)
    assert bool(jnp.all(idx2 == idx))
    ref_bins = jnp.zeros((codebook_size,), jnp.float32).at[idx].add(1.0)
    assert bool(jnp.all(bins == ref_bins))           # fused counts are exact
    ref_esum = jnp.zeros((codebook_size, dim), jnp.float32).at[idx].add(xn_ref)
    assert bool(jnp.allclose(esum_t, ref_esum, atol=3e-2, rtol=3e-2))

    print("KERNEL_OK")
</pallas_src>

<mosaic_0001>
module attributes {stable_mosaic.version = 11 : i64} {
  func.func @_codebook_kernel(%arg0: i32, %arg1: i32, %arg2: memref<32x128xbf16, #tpu.memory_space<vmem>>, %arg3: memref<128x128xbf16, #tpu.memory_space<vmem>>, %arg4: memref<1x1x32xi32, #tpu.memory_space<vmem>>, %arg5: memref<1x128x128xf32, #tpu.memory_space<vmem>>) attributes {dimension_semantics = [#tpu.dimension_semantics<parallel>, #tpu.dimension_semantics<arbitrary>], iteration_bounds = array<i64: 1, 1>, scalar_prefetch = 0 : i64, scratch_operands = 0 : i64, tpu.core_type = #tpu.core_type<tc>, window_params = [{transform_indices = @transform_0, window_bounds = array<i64: 32, 128>}, {pipeline_mode = #tpu.pipeline_mode<synchronous>, transform_indices = @transform_1, window_bounds = array<i64: 128, 128>}, {transform_indices = @transform_2, window_bounds = array<i64: 1, 1, 32>}, {transform_indices = @transform_3, window_bounds = array<i64: 1, 128, 128>}]} {
    %c0_i32 = arith.constant 0 : i32
    %0 = arith.cmpi eq, %arg1, %c0_i32 : i32
    %1 = arith.extui %0 : i1 to i32
    %c0_i32_0 = arith.constant 0 : i32
    %2 = arith.cmpi ne, %1, %c0_i32_0 : i32
    scf.if %2 {
      %cst_22 = arith.constant 0.000000e+00 : f32
      %58 = vector.broadcast %cst_22 : f32 to vector<1x128x128xf32>
      %c0_23 = arith.constant 0 : index
      %c0_24 = arith.constant 0 : index
      %c0_25 = arith.constant 0 : index
      %59 = vector.load %arg5[%c0_23, %c0_24, %c0_25] : memref<1x128x128xf32, #tpu.memory_space<vmem>>, vector<1x128x128xf32>
      tpu.vector_store %arg5[%c0_23, %c0_24, %c0_25], %58 {strides = array<i32>} : memref<1x128x128xf32, #tpu.memory_space<vmem>>, vector<1x128x128xf32>,
    } else {
    }
    %c0 = arith.constant 0 : index
    %c0_1 = arith.constant 0 : index
    %3 = vector.load %arg2[%c0, %c0_1] : memref<32x128xbf16, #tpu.memory_space<vmem>>, vector<32x128xbf16>
    %4 = arith.extf %3 : vector<32x128xbf16> to vector<32x128xf32>
    %5 = arith.mulf %4, %4 : vector<32x128xf32>
    %cst = arith.constant dense<0.000000e+00> : vector<32xf32>
    %6 = vector.multi_reduction <add>, %5, %cst [1] : vector<32x128xf32> to vector<32xf32>
    %7 = vector.shape_cast %6 : vector<32xf32> to vector<32x1xf32>
    %cst_2 = arith.constant 1.000000e-24 : f32
    %8 = vector.broadcast %cst_2 : f32 to vector<32x1xf32>
    %9 = arith.maximumf %7, %8 : vector<32x1xf32>
    %10 = math.rsqrt %9 : vector<32x1xf32>
    %11 = vector.broadcast %10 : vector<32x1xf32> to vector<32x128xf32>
    %12 = arith.mulf %4, %11 : vector<32x128xf32>
    %13 = arith.truncf %12 : vector<32x128xf32> to vector<32x128xbf16>
    %c0_3 = arith.constant 0 : index
    %c0_4 = arith.constant 0 : index
    %14 = vector.load %arg3[%c0_3, %c0_4] : memref<128x128xbf16, #tpu.memory_space<vmem>>, vector<128x128xbf16>
    %cst_5 = arith.constant dense<0.000000e+00> : vector<32x128xf32>
    %15 = tpu.matmul %13, %14, %cst_5 {dimension_numbers = #tpu.dot_dimension_numbers<[1], [0], [0], [1], [0, 0, 1, 1], [], []>} : vector<32x128xbf16>, vector<128x128xbf16>, vector<32x128xf32> -> vector<32x128xf32>
    %16 = tpu.iota {dimensions = array<i32: 1>} : vector<32x128xi32>
    %c64_i32 = arith.constant 64 : i32
    %17 = vector.broadcast %c64_i32 : i32 to vector<32x128xi32>
    %18 = arith.cmpi slt, %16, %17 : vector<32x128xi32>
    %cst_6 = arith.constant -1.000000e+30 : f32
    %19 = vector.broadcast %cst_6 : f32 to vector<32x128xf32>
    %20 = arith.select %18, %15, %19 : vector<32x128xi1>, vector<32x128xf32>
    %cst_7 = arith.constant dense<0xFF800000> : vector<32xf32>
    %21 = vector.multi_reduction <maximumf>, %20, %cst_7 [1] : vector<32x128xf32> to vector<32xf32>
    %22 = vector.shape_cast %21 : vector<32xf32> to vector<32x1xf32>
    %23 = vector.broadcast %22 : vector<32x1xf32> to vector<32x128xf32>
    %24 = arith.cmpf oeq, %20, %23 : vector<32x128xf32>
    %c128_i32 = arith.constant 128 : i32
    %25 = vector.broadcast %c128_i32 : i32 to vector<32x128xi32>
    %26 = arith.select %24, %16, %25 : vector<32x128xi1>, vector<32x128xi32>
    %cst_8 = arith.constant dense<2147483647> : vector<32xi32>
    %27 = vector.multi_reduction <minsi>, %26, %cst_8 [1] : vector<32x128xi32> to vector<32xi32>
    %28 = vector.shape_cast %27 : vector<32xi32> to vector<32x1xi32>
    %29 = vector.shape_cast %28 : vector<32x1xi32> to vector<1x32xi32>
    %30 = vector.shape_cast %29 : vector<1x32xi32> to vector<1x1x32xi32>
    %c0_9 = arith.constant 0 : index
    %c0_10 = arith.constant 0 : index
    %c0_11 = arith.constant 0 : index
    %31 = vector.load %arg4[%c0_9, %c0_10, %c0_11] : memref<1x1x32xi32, #tpu.memory_space<vmem>>, vector<1x1x32xi32>
    tpu.vector_store %arg4[%c0_9, %c0_10, %c0_11], %30 {strides = array<i32>} : memref<1x1x32xi32, #tpu.memory_space<vmem>>, vector<1x1x32xi32>,
    %32 = tpu.iota {dimensions = array<i32: 1>} : vector<1x32xi32>
    %c1_i32 = arith.constant 1 : i32
    %33 = arith.muli %arg0, %c1_i32 : i32
    %34 = arith.addi %33, %arg1 : i32
    %c32_i32 = arith.constant 32 : i32
    %35 = arith.muli %34, %c32_i32 : i32
    %36 = vector.broadcast %35 : i32 to vector<1x32xi32>
    %37 = arith.addi %32, %36 : vector<1x32xi32>
    %c32_i32_12 = arith.constant 32 : i32
    %38 = vector.broadcast %c32_i32_12 : i32 to vector<1x32xi32>
    %39 = arith.cmpi slt, %37, %38 : vector<1x32xi32>
    %40 = tpu.iota {dimensions = array<i32: 0>} : vector<128x32xi32>
    %41 = vector.broadcast %29 : vector<1x32xi32> to vector<128x32xi32>
    %42 = arith.cmpi eq, %40, %41 : vector<128x32xi32>
    %43 = vector.broadcast %39 : vector<1x32xi1> to vector<128x32xi1>
    %44 = arith.andi %42, %43 : vector<128x32xi1>
    %45 = arith.extui %44 : vector<128x32xi1> to vector<128x32xi32>
    %46 = arith.sitofp %45 : vector<128x32xi32> to vector<128x32xf32>
    %47 = arith.truncf %46 : vector<128x32xf32> to vector<128x32xbf16>
    %48 = tpu.iota {dimensions = array<i32: 1>} : vector<32x128xi32>
    %c32_i32_13 = arith.constant 32 : i32
    %49 = vector.broadcast %c32_i32_13 : i32 to vector<32x128xi32>
    %50 = arith.cmpi eq, %48, %49 : vector<32x128xi32>
    %cst_14 = arith.constant 1.000000e+00 : bf16
    %51 = vector.broadcast %cst_14 : bf16 to vector<32x128xbf16>
    %52 = arith.select %50, %51, %13 : vector<32x128xi1>, vector<32x128xbf16>
    %c0_15 = arith.constant 0 : index
    %c0_16 = arith.constant 0 : index
    %c0_17 = arith.constant 0 : index
    %53 = vector.load %arg5[%c0_15, %c0_16, %c0_17] : memref<1x128x128xf32, #tpu.memory_space<vmem>>, vector<1x128x128xf32>
    %cst_18 = arith.constant dense<0.000000e+00> : vector<128x128xf32>
    %54 = tpu.matmul %47, %52, %cst_18 {dimension_numbers = #tpu.dot_dimension_numbers<[1], [0], [0], [1], [0, 0, 1, 1], [], []>} : vector<128x32xbf16>, vector<32x128xbf16>, vector<128x128xf32> -> vector<128x128xf32>
    %55 = vector.shape_cast %54 : vector<128x128xf32> to vector<1x128x128xf32>
    %56 = arith.addf %53, %55 : vector<1x128x128xf32>
    %c0_19 = arith.constant 0 : index
    %c0_20 = arith.constant 0 : index
    %c0_21 = arith.constant 0 : index
    %57 = vector.load %arg5[%c0_19, %c0_20, %c0_21] : memref<1x128x128xf32, #tpu.memory_space<vmem>>, vector<1x128x128xf32>
    tpu.vector_store %arg5[%c0_19, %c0_20, %c0_21], %56 {strides = array<i32>} : memref<1x128x128xf32, #tpu.memory_space<vmem>>, vector<1x128x128xf32>,
    return
  }
  func.func @transform_0(%arg0: i32, %arg1: i32) -> (i32, i32) {
    %c1_i32 = arith.constant 1 : i32
    %0 = arith.muli %arg0, %c1_i32 : i32
    %1 = arith.addi %0, %arg1 : i32
    %c0_i32 = arith.constant 0 : i32
    %c0_i32_0 = arith.constant 0 : i32
    return %1, %c0_i32 : i32, i32
  }
  func.func @transform_1(%arg0: i32, %arg1: i32) -> (i32, i32) {
    %c0_i32 = arith.constant 0 : i32
    %c0_i32_0 = arith.constant 0 : i32
    %c0_i32_1 = arith.constant 0 : i32
    return %c0_i32, %c0_i32_0 : i32, i32
  }
  func.func @transform_2(%arg0: i32, %arg1: i32) -> (i32, i32, i32) {
    %c1_i32 = arith.constant 1 : i32
    %0 = arith.muli %arg0, %c1_i32 : i32
    %1 = arith.addi %0, %arg1 : i32
    %c0_i32 = arith.constant 0 : i32
    %c0_i32_0 = arith.constant 0 : i32
    %c0_i32_1 = arith.constant 0 : i32
    return %1, %c0_i32, %c0_i32_0 : i32, i32, i32
  }
  func.func @transform_3(%arg0: i32, %arg1: i32) -> (i32, i32, i32) {
    %c0_i32 = arith.constant 0 : i32
    %c0_i32_0 = arith.constant 0 : i32
    %c0_i32_1 = arith.constant 0 : i32
    return %arg0, %c0_i32, %c0_i32_0 : i32, i32, i32
  }
}

</mosaic_0001>

<llo_original>
// kernel: tpu_custom_call.1
$region0: #{tpu_custom_call.1}
  #allocation0 [shape = 'u32[]', space=smem, size = 0x4, offset = 0x4, fixed_abs, tag = 'smem constant byte address 0x4 - core index']
  #allocation1 [shape = 'u32[144,128]{1,0:T(1,128)}', space=vmem, size = 0x12000, scoped, tag = 'internal scratch']
  %s0 = inlined_call_operand.hbm [shape: bf16[32,128], index: 0, kind: input, shape index: {}]
  %s1 = inlined_call_operand.hbm [shape: bf16[128,128], index: 1, kind: input, shape index: {}]
  %s2 = inlined_call_operand.hbm [shape: s32[1,1,32], index: 2, kind: output, shape index: {0}]
  %s3 = inlined_call_operand.hbm [shape: f32[1,128,128], index: 3, kind: output, shape index: {1}]
  %4 = xla_tuple %s2, %s3
  %s5 = sld [smem:[#allocation0]]
  $region38: #{tpu_custom_call.1} parent=0
    _
  %s7 = ssub.s32 1, %s5
  %s8 = scalar_select 0, %s7, %s5
  $region1: #{tpu_custom_call.1} parent=0
    #allocation2 [shape = 'u8[8192]{0}', space=vmem, size = 0x2000, scoped, tag = 'input window, operand 0, single buffered']
    #allocation3 [shape = 's32[1]{0}', space=sflag, size = 0x4, scoped, tag = 'scoped memory for tpu_custom_call.1']
    #allocation4 [shape = 's32[1]{0}', space=sflag, size = 0x4, scoped, tag = 'scoped memory for tpu_custom_call.1']
    #allocation5 [shape = 'u8[32768]{0}', space=vmem, size = 0x8000, scoped, tag = 'input window, operand 1, single buffered']
    #allocation6 [shape = 's32[1]{0}', space=sflag, size = 0x4, scoped, tag = 'scoped memory for tpu_custom_call.1']
    #allocation7 [shape = 'u8[512]{0}', space=vmem, size = 0x400, scoped, tag = 'output window, operand 0, single buffered']
    #allocation8 [shape = 'u8[65536]{0}', space=vmem, size = 0x10000, scoped, tag = 'output window, operand 1, single buffered']
    #allocation9 [shape = 's32[1]{0}', space=sflag, size = 0x4, scoped, tag = 'scoped memory for tpu_custom_call.1']
    %9 = vsyncpa [#allocation3], 0
    %10 = vsyncpa [#allocation6], 0
    %11 = vsyncpa [#allocation4], 0
    %12 = vsyncpa [#allocation9], 0
    // Predicated region
    $region2: #{tpu_custom_call.1} parent=1 // pred_check
      _
    $region3: #{tpu_custom_call.1} parent=1 // pred_check_branch
      %14 = sbr.rel (0) target = $region5
    $region4: #{tpu_custom_call.1} parent=1 // pred_region
      %s15 = sadd.s32 0, 0
      %s16 = smul.u32 4, %s15
      %s18 = ssub.s32 256, 256
      %19 = vsyncadd [#allocation3], %s18
      %s20 = smul.addr %s16, 64
      %s21 = scalar_lea.hbm %s0, %s20
      %s22 = sshll.u32 [#allocation2], 4
      %s23 = int_to_ptr.vmem [resolvable:$true] %s22
      %28 = dma.hbm_to_vmem [thread:$0]  %s21, 256, %s23, [#allocation3], 64, 64, 4
    $region5: #{tpu_custom_call.1} parent=1 // pred_fallthru
      _
    // Predicated region
    $region6: #{tpu_custom_call.1} parent=1 // pred_check
      _
    $region7: #{tpu_custom_call.1} parent=1 // pred_check_branch
      %30 = sbr.rel (0) target = $region9
    $region8: #{tpu_custom_call.1} parent=1 // pred_region
      %s32 = ssub.s32 1024, 1024
      %33 = vsyncadd [#allocation6], %s32
      %s34 = sshll.u32 [#allocation5], 4
      %s35 = int_to_ptr.vmem [resolvable:$true] %s34
      %40 = dma.hbm_to_vmem [thread:$0]  %s1, 1024, %s35, [#allocation6], 64, 64, 4
    $region9: #{tpu_custom_call.1} parent=1 // pred_fallthru
      _
    // Predicated region
    $region10: #{tpu_custom_call.1} parent=1 // pred_check
      _
    $region11: #{tpu_custom_call.1} parent=1 // pred_check_branch
      %42 = sbr.rel (0) target = $region13
    $region12: #{tpu_custom_call.1} parent=1 // pred_region
      %43 = dma.done [#allocation3], 256
    $region13: #{tpu_custom_call.1} parent=1 // pred_fallthru
      _
    // Predicated region
    $region14: #{tpu_custom_call.1} parent=1 // pred_check
      _
    $region15: #{tpu_custom_call.1} parent=1 // pred_check_branch
      %45 = sbr.rel (0) target = $region17
    $region16: #{tpu_custom_call.1} parent=1 // pred_region
      %46 = dma.done [#allocation6], 1024
    $region17: #{tpu_custom_call.1} parent=1 // pred_fallthru
      _
    %s47 = sadd.s32 0, 0
    %s48 = smul.u32 4, %s47
    %s49 = sadd.s32 0, 0
    %p54 = scmp.eq.s32.totalorder 0, 0
    // Predicated region
    $region18: #{tpu_custom_call.1} parent=1 // pred_check
      %p55 = pneg %p54
    $region19: #{tpu_custom_call.1} parent=1 // pred_check_branch
      %57 = sbr.rel (%p55) target = $region21
    $region20: #{tpu_custom_call.1} parent=1 // pred_region
      %58 = vst [vmem:[#allocation8] sm:$0xff] 0.0
      %59 = vst [vmem:[#allocation8 + $0x8] sm:$0xff] 0.0
      %60 = vst [vmem:[#allocation8 + $0x10] sm:$0xff] 0.0
      %61 = vst [vmem:[#allocation8 + $0x18] sm:$0xff] 0.0
      %62 = vst [vmem:[#allocation8 + $0x20] sm:$0xff] 0.0
      %63 = vst [vmem:[#allocation8 + $0x28] sm:$0xff] 0.0
      %64 = vst [vmem:[#allocation8 + $0x30] sm:$0xff] 0.0
      %65 = vst [vmem:[#allocation8 + $0x38] sm:$0xff] 0.0
      %66 = vst [vmem:[#allocation8 + $0x40] sm:$0xff] 0.0
      %67 = vst [vmem:[#allocation8 + $0x48] sm:$0xff] 0.0
      %68 = vst [vmem:[#allocation8 + $0x50] sm:$0xff] 0.0
      %69 = vst [vmem:[#allocation8 + $0x58] sm:$0xff] 0.0
      %70 = vst [vmem:[#allocation8 + $0x60] sm:$0xff] 0.0
      %71 = vst [vmem:[#allocation8 + $0x68] sm:$0xff] 0.0
      %72 = vst [vmem:[#allocation8 + $0x70] sm:$0xff] 0.0
      %73 = vst [vmem:[#allocation8 + $0x78] sm:$0xff] 0.0
    $region21: #{tpu_custom_call.1} parent=1 // pred_fallthru
      _
    %v74 = vld [vmem:[#allocation2] sm:$0xf]
    %v75 = vld [vmem:[#allocation2 + $0x4] sm:$0xf]
    %v76 = vld [vmem:[#allocation2 + $0x8] sm:$0xf]
    %v77 = vld [vmem:[#allocation2 + $0xc] sm:$0xf]
    %v78 = vunpack.c.l.bf16 %v74
    %v79 = vunpack.c.l.bf16 %v75
    %v80 = vunpack.c.l.bf16 %v76
    %v81 = vunpack.c.l.bf16 %v77
    %v82 = vmul.f32 %v78, %v78
    %v83 = vmul.f32 %v79, %v79
    %v84 = vmul.f32 %v80, %v80
    %v85 = vmul.f32 %v81, %v81
    %86 = vadd.xlane.f32.xlu0 %v82
    %v87 = vpop.xlane.xlu0 %86
    %88 = vadd.xlane.f32.xlu0 %v83
    %v89 = vpop.xlane.xlu0 %88
    %90 = vadd.xlane.f32.xlu0 %v84
    %v91 = vpop.xlane.xlu0 %90
    %92 = vadd.xlane.f32.xlu0 %v85
    %v93 = vpop.xlane.xlu0 %92
    %v94 = vmax.f32 %v87, 1e-24
    %v95 = vmax.f32 %v89, 1e-24
    %v96 = vmax.f32 %v91, 1e-24
    %v97 = vmax.f32 %v93, 1e-24
    %v98 = vrsqrt.pop %v94
    %v99 = vrsqrt.pop %v95
    %v100 = vrsqrt.pop %v96
    %v101 = vrsqrt.pop %v97
    %v102 = vmul.f32 %v78, %v98
    %v103 = vmul.f32 %v79, %v99
    %v104 = vmul.f32 %v80, %v100
    %v105 = vmul.f32 %v81, %v101
    %v106 = vpack.c.bf16 %v103, %v102
    %v107 = vpack.c.bf16 %v105, %v104
    %v108 = vld [vmem:[#allocation5] sm:$0xf]
    %v109 = vld [vmem:[#allocation5 + $0x4] sm:$0xf]
    %v110 = vld [vmem:[#allocation5 + $0x8] sm:$0xf]
    %v111 = vld [vmem:[#allocation5 + $0xc] sm:$0xf]
    %v112 = vld [vmem:[#allocation5 + $0x10] sm:$0xf]
    %v113 = vld [vmem:[#allocation5 + $0x14] sm:$0xf]
    %v114 = vld [vmem:[#allocation5 + $0x18] sm:$0xf]
    %v115 = vld [vmem:[#allocation5 + $0x1c] sm:$0xf]
    %v116 = vld [vmem:[#allocation5 + $0x20] sm:$0xf]
    %v117 = vld [vmem:[#allocation5 + $0x24] sm:$0xf]
    %v118 = vld [vmem:[#allocation5 + $0x28] sm:$0xf]
    %v119 = vld [vmem:[#allocation5 + $0x2c] sm:$0xf]
    %v120 = vld [vmem:[#allocation5 + $0x30] sm:$0xf]
    %v121 = vld [vmem:[#allocation5 + $0x34] sm:$0xf]
    %v122 = vld [vmem:[#allocation5 + $0x38] sm:$0xf]
    %v123 = vld [vmem:[#allocation5 + $0x3c] sm:$0xf]
    %v140 = vunpack.c.l.b16 %v108
    %v141 = vunpack.c.l.b16 %v109
    %v142 = vunpack.c.l.b16 %v110
    %v143 = vunpack.c.l.b16 %v111
    %v144 = vunpack.c.l.b16 %v112
    %v145 = vunpack.c.l.b16 %v113
    %v146 = vunpack.c.l.b16 %v114
    %v147 = vunpack.c.l.b16 %v115
    %v148 = vunpack.c.l.b16 %v116
    %v149 = vunpack.c.l.b16 %v117
    %v150 = vunpack.c.l.b16 %v118
    %v151 = vunpack.c.l.b16 %v119
    %v152 = vunpack.c.l.b16 %v120
    %v153 = vunpack.c.l.b16 %v121
    %v154 = vunpack.c.l.b16 %v122
    %v155 = vunpack.c.l.b16 %v123
    %v156 = vpack.c.b16 %v141, %v140
    %v157 = vpack.c.b16 %v143, %v142
    %v158 = vpack.c.b16 %v145, %v144
    %v159 = vpack.c.b16 %v147, %v146
    %v160 = vpack.c.b16 %v149, %v148
    %v161 = vpack.c.b16 %v151, %v150
    %v162 = vpack.c.b16 %v153, %v152
    %v163 = vpack.c.b16 %v155, %v154
    %172 = vmatprep.subr.bf16.mxu0 0
    %173 = vmatpush1.bf16.msra.mxu0 %v156
    %174 = vmatprep.subr.bf16.mxu0 0
    %175 = vmatpush1.bf16.msra.mxu0 %v157
    %176 = vmatprep.subr.bf16.mxu0 0
    %177 = vmatpush1.bf16.msra.mxu0 %v158
    %178 = vmatprep.subr.bf16.mxu0 0
    %179 = vmatpush1.bf16.msra.mxu0 %v159
    %180 = vmatprep.subr.bf16.mxu0 0
    %181 = vmatpush1.bf16.msra.mxu0 %v160
    %182 = vmatprep.subr.bf16.mxu0 0
    %183 = vmatpush1.bf16.msra.mxu0 %v161
    %184 = vmatprep.subr.bf16.mxu0 0
    %185 = vmatpush1.bf16.msra.mxu0 %v162
    %186 = vmatprep.subr.bf16.mxu0 0
    %187 = vmatpush1.bf16.msra.mxu0 %v163
    %188 = vmatprep.subr.bf16.mxu0 0
    %189 = vmatpush1.bf16.msra.mxu0 0
    %190 = vmatprep.subr.bf16.mxu0 0
    %191 = vmatpush1.bf16.msra.mxu0 0
    %192 = vmatprep.subr.bf16.mxu0 0
    %193 = vmatpush1.bf16.msra.mxu0 0
    %194 = vmatprep.subr.bf16.mxu0 0
    %195 = vmatpush1.bf16.msra.mxu0 0
    %196 = vmatprep.subr.bf16.mxu0 0
    %197 = vmatpush1.bf16.msra.mxu0 0
    %198 = vmatprep.subr.bf16.mxu0 0
    %199 = vmatpush1.bf16.msra.mxu0 0
    %200 = vmatprep.subr.bf16.mxu0 0
    %201 = vmatpush1.bf16.msra.mxu0 0
    %202 = vmatprep.subr.bf16.mxu0 0
    %203 = vmatpush1.bf16.msra.mxu0 0
    %204 = vmatprep.mubr.bf16.mxu0 0
    %205 = vmatmul.mubr.bf16.gmra.mrb[0].mxu0 %v106
    %v206 = vpop.f32.mrb[0].mxu0
    %v207 = vadd.f32 0.0, %v206
    %v208 = vpop.f32.mrb[0].mxu0
    %v209 = vpop.f32.mrb[0].mxu0
    %v210 = vadd.f32 0.0, %v209
    %v211 = vpop.f32.mrb[0].mxu0
    %212 = vmatprep.mubr.bf16.mxu0 0
    %213 = vmatmul.mubr.bf16.gmra.mrb[0].mxu0 %v107
    %v214 = vpop.f32.mrb[0].mxu0
    %v215 = vadd.f32 0.0, %v214
    %v216 = vpop.f32.mrb[0].mxu0
    %v217 = vpop.f32.mrb[0].mxu0
    %v218 = vadd.f32 0.0, %v217
    %v219 = vpop.f32.mrb[0].mxu0
    %220 = vdwg.mxu0
    %v221 = vlaneseq
    %v222 = vand.u32 %v221, 127
    %vm223 = vcmp.lt.s32.totalorder %v222, 64
    %v224 = vsel %vm223, %v207, -1e+30
    %v225 = vsel %vm223, %v210, -1e+30
    %v226 = vsel %vm223, %v215, -1e+30
    %v227 = vsel %vm223, %v218, -1e+30
    %228 = vmax.xlane.f32.xlu0 %v224
    %v229 = vpop.xlane.xlu0 %228
    %230 = vmax.xlane.f32.xlu0 %v225
    %v231 = vpop.xlane.xlu0 %230
    %232 = vmax.xlane.f32.xlu0 %v226
    %v233 = vpop.xlane.xlu0 %232
    %234 = vmax.xlane.f32.xlu0 %v227
    %v235 = vpop.xlane.xlu0 %234
    %vm236 = vcmp.eq.f32.partialorder %v224, %v229
    %vm237 = vcmp.eq.f32.partialorder %v225, %v231
    %vm238 = vcmp.eq.f32.partialorder %v226, %v233
    %vm239 = vcmp.eq.f32.partialorder %v227, %v235
    %v240 = vsel %vm236, %v222, 128
    %v241 = vsel %vm237, %v222, 128
    %v242 = vsel %vm238, %v222, 128
    %v243 = vsel %vm239, %v222, 128
    %v244 = vand.u32 %v240, 65535
    %v245 = vshra.s32 %v240, 16
    %v246 = vcvt.s32.f32 %v244
    %v247 = vcvt.s32.f32 %v245
    %248 = vmin.xlane.f32.xlu0 %v247
    %v249 = vpop.xlane.xlu0 %248
    %vm250 = vcmp.eq.f32.partialorder %v247, %v249
    %v251 = vsel %vm250, %v246, inf
    %252 = vmin.xlane.f32.xlu0 %v251
    %v253 = vpop.xlane.xlu0 %252
    %v254 = vcvt.f32.s32 %v253
    %v255 = vcvt.f32.s32 %v249
    %v256 = vshll.u32 %v255, 16
    %v257 = vadd.s32 %v256, %v254
    %v258 = vand.u32 %v241, 65535
    %v259 = vshra.s32 %v241, 16
    %v260 = vcvt.s32.f32 %v258
    %v261 = vcvt.s32.f32 %v259
    %262 = vmin.xlane.f32.xlu0 %v261
    %v263 = vpop.xlane.xlu0 %262
    %vm264 = vcmp.eq.f32.partialorder %v261, %v263
    %v265 = vsel %vm264, %v260, inf
    %266 = vmin.xlane.f32.xlu0 %v265
    %v267 = vpop.xlane.xlu0 %266
    %v268 = vcvt.f32.s32 %v267
    %v269 = vcvt.f32.s32 %v263
    %v270 = vshll.u32 %v269, 16
    %v271 = vadd.s32 %v270, %v268
    %v272 = vand.u32 %v242, 65535
    %v273 = vshra.s32 %v242, 16
    %v274 = vcvt.s32.f32 %v272
    %v275 = vcvt.s32.f32 %v273
    %276 = vmin.xlane.f32.xlu0 %v275
    %v277 = vpop.xlane.xlu0 %276
    %vm278 = vcmp.eq.f32.partialorder %v275, %v277
    %v279 = vsel %vm278, %v274, inf
    %280 = vmin.xlane.f32.xlu0 %v279
    %v281 = vpop.xlane.xlu0 %280
    %v282 = vcvt.f32.s32 %v281
    %v283 = vcvt.f32.s32 %v277
    %v284 = vshll.u32 %v283, 16
    %v285 = vadd.s32 %v284, %v282
    %v286 = vand.u32 %v243, 65535
    %v287 = vshra.s32 %v243, 16
    %v288 = vcvt.s32.f32 %v286
    %v289 = vcvt.s32.f32 %v287
    %290 = vmin.xlane.f32.xlu0 %v289
    %v291 = vpop.xlane.xlu0 %290
    %vm292 = vcmp.eq.f32.partialorder %v289, %v291
    %v293 = vsel %vm292, %v288, inf
    %294 = vmin.xlane.f32.xlu0 %v293
    %v295 = vpop.xlane.xlu0 %294
    %v296 = vcvt.f32.s32 %v295
    %v297 = vcvt.f32.s32 %v291
    %v298 = vshll.u32 %v297, 16
    %v299 = vadd.s32 %v298, %v296
    %v300 = vlaneseq
    %v301 = vshrl.u32 %v300, 7
    %v302 = vsub.s32 %v222, %v301
    %v303 = vrot.slane %v257, %v302
    %v304 = vadd.s32 %v222, 4294967288
    %v305 = vlaneseq
    %v306 = vshrl.u32 %v305, 7
    %v307 = vsub.s32 %v304, %v306
    %v308 = vrot.slane %v271, %v307
    %vm309 = vcmask 130112
    %v310 = vsel %vm309, %v308, %v303
    %v311 = vadd.s32 %v222, 4294967280
    %v312 = vlaneseq
    %v313 = vshrl.u32 %v312, 7
    %v314 = vsub.s32 %v311, %v313
    %v315 = vrot.slane %v285, %v314
    %vm316 = vcmask 195712
    %v317 = vsel %vm316, %v315, %v310
    %v318 = vadd.s32 %v222, 4294967272
    %v319 = vlaneseq
    %v320 = vshrl.u32 %v319, 7
    %v321 = vsub.s32 %v318, %v320
    %v322 = vrot.slane %v299, %v321
    %vm323 = vcmask 261312
    %v324 = vsel %vm323, %v322, %v317
    %vm325 = vcmask 253952
    %326 = vst.msk [vmem:[#allocation7] sm:$0x1] %vm325, %v324
    %s327 = sadd.s32 0, 0
    %s328 = smul.u32 %s327, 32
    %v329 = vstv %s328
    %v330 = vadd.s32 %v222, %v329
    %vm331 = vcmp.lt.s32.totalorder %v330, 32
    %v332 = vlaneseq
    %v333 = vshrl.u32 %v332, 7
    %v334 = vadd.s32 %v333, 8
    %v335 = vadd.s32 %v333, 16
    %v336 = vadd.s32 %v333, 24
    %v337 = vadd.s32 %v333, 32
    %v338 = vadd.s32 %v333, 40
    %v339 = vadd.s32 %v333, 48
    %v340 = vadd.s32 %v333, 56
    %v341 = vadd.s32 %v333, 64
    %v342 = vadd.s32 %v333, 72
    %v343 = vadd.s32 %v333, 80
    %v344 = vadd.s32 %v333, 88
    %v345 = vadd.s32 %v333, 96
    %v346 = vadd.s32 %v333, 104
    %v347 = vadd.s32 %v333, 112
    %v348 = vadd.s32 %v333, 120
    %vm349 = vcmask 1042434
    %v350 = vsel %vm349, %v324, %v324
    %vm351 = vcmask 1043459
    %v352 = vsel %vm351, %v324, %v350
    %vm353 = vcmask 1044484
    %v354 = vsel %vm353, %v324, %v352
    %vm355 = vcmask 1045509
    %v356 = vsel %vm355, %v324, %v354
    %vm357 = vcmask 1046534
    %v358 = vsel %vm357, %v324, %v356
    %vm359 = vcmask 1047559
    %v360 = vsel %vm359, %v324, %v358
    %vm361 = vcmp.eq.s32.totalorder %v333, %v360
    %vm362 = vcmp.eq.s32.totalorder %v334, %v360
    %vm363 = vcmp.eq.s32.totalorder %v335, %v360
    %vm364 = vcmp.eq.s32.totalorder %v336, %v360
    %vm365 = vcmp.eq.s32.totalorder %v337, %v360
    %vm366 = vcmp.eq.s32.totalorder %v338, %v360
    %vm367 = vcmp.eq.s32.totalorder %v339, %v360
    %vm368 = vcmp.eq.s32.totalorder %v340, %v360
    %vm369 = vcmp.eq.s32.totalorder %v341, %v360
    %vm370 = vcmp.eq.s32.totalorder %v342, %v360
    %vm371 = vcmp.eq.s32.totalorder %v343, %v360
    %vm372 = vcmp.eq.s32.totalorder %v344, %v360
    %vm373 = vcmp.eq.s32.totalorder %v345, %v360
    %vm374 = vcmp.eq.s32.totalorder %v346, %v360
    %vm375 = vcmp.eq.s32.totalorder %v347, %v360
    %vm376 = vcmp.eq.s32.totalorder %v348, %v360
    %v377 = vsel %vm331, 1, 0
    %vm378 = vcmp.eq.s32.totalorder %v377, 1
    %vm379 = vmand %vm361, %vm378
    %vm380 = vmand %vm362, %vm378
    %vm381 = vmand %vm363, %vm378
    %vm382 = vmand %vm364, %vm378
    %vm383 = vmand %vm365, %vm378
    %vm384 = vmand %vm366, %vm378
    %vm385 = vmand %vm367, %vm378
    %vm386 = vmand %vm368, %vm378
    %vm387 = vmand %vm369, %vm378
    %vm388 = vmand %vm370, %vm378
    %vm389 = vmand %vm371, %vm378
    %vm390 = vmand %vm372, %vm378
    %vm391 = vmand %vm373, %vm378
    %vm392 = vmand %vm374, %vm378
    %vm393 = vmand %vm375, %vm378
    %vm394 = vmand %vm376, %vm378
    %v395 = vsel %vm379, 1, 0
    %v396 = vsel %vm380, 1, 0
    %v397 = vsel %vm381, 1, 0
    %v398 = vsel %vm382, 1, 0
    %v399 = vsel %vm383, 1, 0
    %v400 = vsel %vm384, 1, 0
    %v401 = vsel %vm385, 1, 0
    %v402 = vsel %vm386, 1, 0
    %v403 = vsel %vm387, 1, 0
    %v404 = vsel %vm388, 1, 0
    %v405 = vsel %vm389, 1, 0
    %v406 = vsel %vm390, 1, 0
    %v407 = vsel %vm391, 1, 0
    %v408 = vsel %vm392, 1, 0
    %v409 = vsel %vm393, 1, 0
    %v410 = vsel %vm394, 1, 0
    %v411 = vcvt.s32.f32 %v395
    %v412 = vcvt.s32.f32 %v396
    %v413 = vcvt.s32.f32 %v397
    %v414 = vcvt.s32.f32 %v398
    %v415 = vcvt.s32.f32 %v399
    %v416 = vcvt.s32.f32 %v400
    %v417 = vcvt.s32.f32 %v401
    %v418 = vcvt.s32.f32 %v402
    %v419 = vcvt.s32.f32 %v403
    %v420 = vcvt.s32.f32 %v404
    %v421 = vcvt.s32.f32 %v405
    %v422 = vcvt.s32.f32 %v406
    %v423 = vcvt.s32.f32 %v407
    %v424 = vcvt.s32.f32 %v408
    %v425 = vcvt.s32.f32 %v409
    %v426 = vcvt.s32.f32 %v410
    %v427 = vpack.c.bf16 %v412, %v411
    %v428 = vpack.c.bf16 %v414, %v413
    %v429 = vpack.c.bf16 %v416, %v415
    %v430 = vpack.c.bf16 %v418, %v417
    %v431 = vpack.c.bf16 %v420, %v419
    %v432 = vpack.c.bf16 %v422, %v421
    %v433 = vpack.c.bf16 %v424, %v423
    %v434 = vpack.c.bf16 %v426, %v425
    %vm435 = vcmp.eq.s32.totalorder %v222, 32
    %vm436 = vmpackc.low %vm435, %vm435
    %v437 = vsel %vm436, 65537, 0
    %v438 = vlaneseq
    %v439 = vshrl.u32 %v438, 7
    %v440 = vsub.s32 0, %v439
    %v441 = vrot.slane %v437, %v440
    %vm442 = vcmp.ne.s16.totalorder %v441, 0
    %v443 = vsel %vm442, 1065369472, %v106
    %v444 = vsel %vm442, 1065369472, %v107
    %v445 = vld [vmem:[#allocation8] sm:$0xff]
    %v446 = vld [vmem:[#allocation8 + $0x8] sm:$0xff]
    %v447 = vld [vmem:[#allocation8 + $0x10] sm:$0xff]
    %v448 = vld [vmem:[#allocation8 + $0x18] sm:$0xff]
    %v449 = vld [vmem:[#allocation8 + $0x20] sm:$0xff]
    %v450 = vld [vmem:[#allocation8 + $0x28] sm:$0xff]
    %v451 = vld [vmem:[#allocation8 + $0x30] sm:$0xff]
    %v452 = vld [vmem:[#allocation8 + $0x38] sm:$0xff]
    %v453 = vld [vmem:[#allocation8 + $0x40] sm:$0xff]
    %v454 = vld [vmem:[#allocation8 + $0x48] sm:$0xff]
    %v455 = vld [vmem:[#allocation8 + $0x50] sm:$0xff]
    %v456 = vld [vmem:[#allocation8 + $0x58] sm:$0xff]
    %v457 = vld [vmem:[#allocation8 + $0x60] sm:$0xff]
    %v458 = vld [vmem:[#allocation8 + $0x68] sm:$0xff]
    %v459 = vld [vmem:[#allocation8 + $0x70] sm:$0xff]
    %v460 = vld [vmem:[#allocation8 + $0x78] sm:$0xff]
    %vm461 = vcmask 261120
    %v463 = vsel %vm461, %v427, 0
    %v466 = vsel %vm461, %v428, 0
    %v469 = vsel %vm461, %v429, 0
    %v472 = vsel %vm461, %v430, 0
    %v475 = vsel %vm461, %v431, 0
    %v478 = vsel %vm461, %v432, 0
    %v481 = vsel %vm461, %v433, 0
    %v484 = vsel %vm461, %v434, 0
    %486 = vmatprep.subr.bf16.mxu0 0
    %487 = vmatpush1.bf16.msra.mxu0 %v443
    %488 = vmatprep.subr.bf16.mxu0 0
    %489 = vmatpush1.bf16.msra.mxu0 %v444
    %490 = vmatprep.subr.bf16.mxu0 0
    %491 = vmatpush1.bf16.msra.mxu0 0
    %492 = vmatprep.subr.bf16.mxu0 0
    %493 = vmatpush1.bf16.msra.mxu0 0
    %494 = vmatprep.subr.bf16.mxu0 0
    %495 = vmatpush1.bf16.msra.mxu0 0
    %496 = vmatprep.subr.bf16.mxu0 0
    %497 = vmatpush1.bf16.msra.mxu0 0
    %498 = vmatprep.subr.bf16.mxu0 0
    %499 = vmatpush1.bf16.msra.mxu0 0
    %500 = vmatprep.subr.bf16.mxu0 0
    %501 = vmatpush1.bf16.msra.mxu0 0
    %502 = vmatprep.subr.bf16.mxu0 0
    %503 = vmatpush1.bf16.msra.mxu0 0
    %504 = vmatprep.subr.bf16.mxu0 0
    %505 = vmatpush1.bf16.msra.mxu0 0
    %506 = vmatprep.subr.bf16.mxu0 0
    %507 = vmatpush1.bf16.msra.mxu0 0
    %508 = vmatprep.subr.bf16.mxu0 0
    %509 = vmatpush1.bf16.msra.mxu0 0
    %510 = vmatprep.subr.bf16.mxu0 0
    %511 = vmatpush1.bf16.msra.mxu0 0
    %512 = vmatprep.subr.bf16.mxu0 0
    %513 = vmatpush1.bf16.msra.mxu0 0
    %514 = vmatprep.subr.bf16.mxu0 0
    %515 = vmatpush1.bf16.msra.mxu0 0
    %516 = vmatprep.subr.bf16.mxu0 0
    %517 = vmatpush1.bf16.msra.mxu0 0
    %518 = vmatprep.mubr.bf16.mxu0 0
    %519 = vmatmul.mubr.bf16.gmra.mrb[0].mxu0 %v463
    %v520 = vpop.f32.mrb[0].mxu0
    %v521 = vadd.f32 0.0, %v520
    %v522 = vpop.f32.mrb[0].mxu0
    %v523 = vpop.f32.mrb[0].mxu0
    %v524 = vadd.f32 0.0, %v523
    %v525 = vpop.f32.mrb[0].mxu0
    %526 = vmatprep.mubr.bf16.mxu0 0
    %527 = vmatmul.mubr.bf16.gmra.mrb[0].mxu0 %v466
    %v528 = vpop.f32.mrb[0].mxu0
    %v529 = vadd.f32 0.0, %v528
    %v530 = vpop.f32.mrb[0].mxu0
    %v531 = vpop.f32.mrb[0].mxu0
    %v532 = vadd.f32 0.0, %v531
    %v533 = vpop.f32.mrb[0].mxu0
    %534 = vmatprep.mubr.bf16.mxu0 0
    %535 = vmatmul.mubr.bf16.gmra.mrb[0].mxu0 %v469
    %v536 = vpop.f32.mrb[0].mxu0
    %v537 = vadd.f32 0.0, %v536
    %v538 = vpop.f32.mrb[0].mxu0
    %v539 = vpop.f32.mrb[0].mxu0
    %v540 = vadd.f32 0.0, %v539
    %v541 = vpop.f32.mrb[0].mxu0
    %542 = vmatprep.mubr.bf16.mxu0 0
    %543 = vmatmul.mubr.bf16.gmra.mrb[0].mxu0 %v472
    %v544 = vpop.f32.mrb[0].mxu0
    %v545 = vadd.f32 0.0, %v544
    %v546 = vpop.f32.mrb[0].mxu0
    %v547 = vpop.f32.mrb[0].mxu0
    %v548 = vadd.f32 0.0, %v547
    %v549 = vpop.f32.mrb[0].mxu0
    %550 = vmatprep.mubr.bf16.mxu0 0
    %551 = vmatmul.mubr.bf16.gmra.mrb[0].mxu0 %v475
    %v552 = vpop.f32.mrb[0].mxu0
    %v553 = vadd.f32 0.0, %v552
    %v554 = vpop.f32.mrb[0].mxu0
    %v555 = vpop.f32.mrb[0].mxu0
    %v556 = vadd.f32 0.0, %v555
    %v557 = vpop.f32.mrb[0].mxu0
    %558 = vmatprep.mubr.bf16.mxu0 0
    %559 = vmatmul.mubr.bf16.gmra.mrb[0].mxu0 %v478
    %v560 = vpop.f32.mrb[0].mxu0
    %v561 = vadd.f32 0.0, %v560
    %v562 = vpop.f32.mrb[0].mxu0
    %v563 = vpop.f32.mrb[0].mxu0
    %v564 = vadd.f32 0.0, %v563
    %v565 = vpop.f32.mrb[0].mxu0
    %566 = vmatprep.mubr.bf16.mxu0 0
    %567 = vmatmul.mubr.bf16.gmra.mrb[0].mxu0 %v481
    %v568 = vpop.f32.mrb[0].mxu0
    %v569 = vadd.f32 0.0, %v568
    %v570 = vpop.f32.mrb[0].mxu0
    %v571 = vpop.f32.mrb[0].mxu0
    %v572 = vadd.f32 0.0, %v571
    %v573 = vpop.f32.mrb[0].mxu0
    %574 = vmatprep.mubr.bf16.mxu0 0
    %575 = vmatmul.mubr.bf16.gmra.mrb[0].mxu0 %v484
    %v576 = vpop.f32.mrb[0].mxu0
    %v577 = vadd.f32 0.0, %v576
    %v578 = vpop.f32.mrb[0].mxu0
    %v579 = vpop.f32.mrb[0].mxu0
    %v580 = vadd.f32 0.0, %v579
    %v581 = vpop.f32.mrb[0].mxu0
    %582 = vdwg.mxu0
    %v583 = vadd.f32 %v445, %v521
    %v584 = vadd.f32 %v446, %v524
    %v585 = vadd.f32 %v447, %v529
    %v586 = vadd.f32 %v448, %v532
    %v587 = vadd.f32 %v449, %v537
    %v588 = vadd.f32 %v450, %v540
    %v589 = vadd.f32 %v451, %v545
    %v590 = vadd.f32 %v452, %v548
    %v591 = vadd.f32 %v453, %v553
    %v592 = vadd.f32 %v454, %v556
    %v593 = vadd.f32 %v455, %v561
    %v594 = vadd.f32 %v456, %v564
    %v595 = vadd.f32 %v457, %v569
    %v596 = vadd.f32 %v458, %v572
    %v597 = vadd.f32 %v459, %v577
    %v598 = vadd.f32 %v460, %v580
    %599 = vst [vmem:[#allocation8] sm:$0xff] %v583
    %600 = vst [vmem:[#allocation8 + $0x8] sm:$0xff] %v584
    %601 = vst [vmem:[#allocation8 + $0x10] sm:$0xff] %v585
    %602 = vst [vmem:[#allocation8 + $0x18] sm:$0xff] %v586
    %603 = vst [vmem:[#allocation8 + $0x20] sm:$0xff] %v587
    %604 = vst [vmem:[#allocation8 + $0x28] sm:$0xff] %v588
    %605 = vst [vmem:[#allocation8 + $0x30] sm:$0xff] %v589
    %606 = vst [vmem:[#allocation8 + $0x38] sm:$0xff] %v590
    %607 = vst [vmem:[#allocation8 + $0x40] sm:$0xff] %v591
    %608 = vst [vmem:[#allocation8 + $0x48] sm:$0xff] %v592
    %609 = vst [vmem:[#allocation8 + $0x50] sm:$0xff] %v593
    %610 = vst [vmem:[#allocation8 + $0x58] sm:$0xff] %v594
    %611 = vst [vmem:[#allocation8 + $0x60] sm:$0xff] %v595
    %612 = vst [vmem:[#allocation8 + $0x68] sm:$0xff] %v596
    %613 = vst [vmem:[#allocation8 + $0x70] sm:$0xff] %v597
    %614 = vst [vmem:[#allocation8 + $0x78] sm:$0xff] %v598
    // Predicated region
    $region22: #{tpu_custom_call.1} parent=1 // pred_check
      _
    $region23: #{tpu_custom_call.1} parent=1 // pred_check_branch
      %616 = sbr.rel (0) target = $region25
    $region24: #{tpu_custom_call.1} parent=1 // pred_region
      %s617 = sadd.s32 0, 0
      %s619 = ssub.s32 16, 16
      %620 = vsyncadd [#allocation4], %s619
      %s621 = smul.addr %s617, 16
      %s622 = scalar_lea.hbm %s2, %s621
      %s624 = sshll.u32 [#allocation7], 4
      %s625 = int_to_ptr.vmem [resolvable:$true] %s624
      %627 = dma.vmem_to_hbm [thread:$0]  %s625, 16, %s622, [#allocation4]
    $region25: #{tpu_custom_call.1} parent=1 // pred_fallthru
      _
    // Predicated region
    $region26: #{tpu_custom_call.1} parent=1 // pred_check
      _
    $region27: #{tpu_custom_call.1} parent=1 // pred_check_branch
      %629 = sbr.rel (0) target = $region29
    $region28: #{tpu_custom_call.1} parent=1 // pred_region
      %s631 = ssub.s32 2048, 2048
      %632 = vsyncadd [#allocation9], %s631
      %s633 = sshll.u32 [#allocation8], 4
      %s634 = int_to_ptr.vmem [resolvable:$true] %s633
      %639 = dma.vmem_to_hbm [thread:$0]  %s634, 2048, %s3, [#allocation9], 128, 128, 8
    $region29: #{tpu_custom_call.1} parent=1 // pred_fallthru
      _
    // Predicated region
    $region30: #{tpu_custom_call.1} parent=1 // pred_check
      _
    $region31: #{tpu_custom_call.1} parent=1 // pred_check_branch
      %641 = sbr.rel (0) target = $region33
    $region32: #{tpu_custom_call.1} parent=1 // pred_region
      %642 = dma.done [#allocation4], 16
    $region33: #{tpu_custom_call.1} parent=1 // pred_fallthru
      _
    // Predicated region
    $region34: #{tpu_custom_call.1} parent=1 // pred_check
      _
    $region35: #{tpu_custom_call.1} parent=1 // pred_check_branch
      %644 = sbr.rel (0) target = $region37
    $region36: #{tpu_custom_call.1} parent=1 // pred_region
      %645 = dma.done [#allocation9], 2048
    $region37: #{tpu_custom_call.1} parent=1 // pred_fallthru
      _
    %646 = vsyncpa [#allocation3], 1
    %647 = vsyncpa [#allocation6], 1
    %648 = vsyncpa [#allocation4], 1
    %649 = vsyncpa [#allocation9], 1

</llo_original>
